<compile_context>
chip_gen: v7x
topology: tpu7x:2x2x1
jax: 0.10.0
libtpu: 0.0.40
codegen_flags: <defaults>
</compile_context>

<pallas_src>
import functools

import jax
import jax.numpy as jnp
from jax.experimental import pallas as pl
from jax.experimental.pallas import tpu as pltpu


def _softcode_body(x_ref, w_lo_ref, w_ref, emb_ref, idx_ref, *, num_codes):
    """One row tile: logits -> argmax over codes -> exact f32 gather."""
    x = x_ref[...]                                   # (TM, D_pad)
    w_lo = w_lo_ref[...]                             # (K_pad, D_pad) f32/bf16
    tm = x.shape[0]
    k_pad = w_lo.shape[0]

    # logits = x @ W^T : NT matmul (contract the shared D axis of both).
    logits = jax.lax.dot_general(
        x, w_lo, (((1,), (1,)), ((), ())),
        preferred_element_type=jnp.float32)          # (TM, K_pad) f32

    # Padded codebook rows must never win the argmax: one broadcast VPU add
    # (cheaper than a full (TM, K_pad) compare + select).
    if num_codes < k_pad:
        col = jax.lax.broadcasted_iota(jnp.int32, (1, k_pad), 1)
        bias = jnp.where(col < num_codes, 0.0, -1e30).astype(jnp.float32)
        logits = logits + bias

    # argmax over K: first index among the maxima (matches torch for distinct
    # maxima; exact ties are measure-zero for float inputs).
    iota = jax.lax.broadcasted_iota(jnp.int32, (tm, k_pad), 1)
    maxv = jnp.max(logits, axis=-1, keepdims=True)                    # (TM, 1)
    idx = jnp.min(jnp.where(logits == maxv, iota, k_pad), axis=-1)    # (TM,)
    # NaN rows make every compare false -> idx == k_pad; clamp to stay in
    # range (torch would propagate the NaN instead).
    idx = jnp.minimum(idx, num_codes - 1)

    # Exact gather W[idx] via a one-hot matmul in f32 (codebook rows exactly).
    # TODO(synk): for K >= ~2048 tile K with a running (max, argmax) carried in
    # scratch and gather once per row, avoiding the doubled MXU flops and the
    # (TM, K_pad) live intermediates.
    onehot = (iota == idx[:, None]).astype(jnp.float32)               # (TM, K_pad)
    emb = jnp.dot(onehot, w_ref[...], preferred_element_type=jnp.float32)

    emb_ref[...] = emb.astype(emb_ref.dtype)
    idx_ref[...] = idx.reshape(idx_ref.shape)        # lane-dense int32 slab


def _softcode_kernel_shared(x_ref, w_ref, emb_ref, idx_ref, *, num_codes):
    # f32 mode: the same codebook operand serves both the logits matmul and
    # the gather (single resident copy).
    _softcode_body(x_ref, w_ref, w_ref, emb_ref, idx_ref, num_codes=num_codes)


def softcode_forward(inputs, weight, *, tm=256, logits_in_bf16=False,
                     out_dtype=None):
    """SoftCode.forward(inputs=...): returns (embed, indices).

    inputs: [B, T, D] float32 activations.
    weight: [K, D]    float32 codebook / embedding table.

    tm: rows per grid step, multiple of 128.  Per-step VMEM is roughly
        4*tm*D_pad*4 (double-buffered input + output tiles) plus the resident
        codebook plus ~3*tm*K_pad*4 of in-kernel intermediates.  Defaults to
        256 which fits v5e's 16 MiB / v7x's 32 MiB scoped VMEM for typical
        codebooks; raise to 512/1024 on v6e for large B*T, lower for K >= 2K.
    logits_in_bf16: run the *ordering* matmul in bf16 (v6e/v7x MXU fast path;
        operands are cast once in the wrapper).  The gather stays exact f32,
        but near-tied codes may resolve differently than the f32 reference.
    out_dtype: dtype of the returned embeddings (default inputs.dtype); bf16
        halves the writeback traffic if downstream tolerates it.
    """
    B, T, D = inputs.shape
    K, Dw = weight.shape
    if D != Dw:
        raise ValueError(f"code_dim mismatch: inputs {D} vs weight {Dw}")
    out_dtype = inputs.dtype if out_dtype is None else out_dtype

    N = B * T
    D_pad = pl.cdiv(D, 128) * 128
    K_pad = pl.cdiv(K, 128) * 128

    # Row tile: multiple of 128, no larger than the row-padded problem, and
    # split so a single-block grid doesn't leave one v7x TensorCore idle.
    assert tm % 128 == 0 and tm > 0, "tm must be a positive multiple of 128"
    n128 = pl.cdiv(N, 128) * 128
    tm = min(tm, n128)
    if pl.cdiv(N, tm) == 1 and n128 > 128:
        tm = pl.cdiv(pl.cdiv(N, 2), 128) * 128
    N_pad = pl.cdiv(N, tm) * tm
    grid = (N_pad // tm,)

    # Pad only when needed (the pad is an extra HBM round trip before the
    # kernel); zero D-columns contribute 0 to every dot product, padded K rows
    # are masked in-kernel, padded N rows are sliced off afterwards.
    x2d = inputs.reshape(N, D)
    if (N_pad, D_pad) != (N, D):
        x2d = jnp.pad(x2d, ((0, N_pad - N), (0, D_pad - D)))
    w_full = weight.astype(jnp.float32)
    if (K_pad, D_pad) != (K, D):
        w_full = jnp.pad(w_full, ((0, K_pad - K), (0, D_pad - D)))

    if logits_in_bf16:
        # Wrapper-side casts (never per-grid-step in-kernel).
        x_in = x2d.astype(jnp.bfloat16)
        operands = (x_in, w_full.astype(jnp.bfloat16), w_full)
        kernel = functools.partial(_softcode_body, num_codes=K)
    else:
        x_in = x2d.astype(jnp.float32)
        operands = (x_in, w_full)
        kernel = functools.partial(_softcode_kernel_shared, num_codes=K)

    x_bytes = x_in.dtype.itemsize
    out_bytes = jnp.dtype(out_dtype).itemsize
    cb_bytes = sum(int(op.size) * op.dtype.itemsize for op in operands[1:])

    def run(single_buffer_codebook, idx_1d):
        cb_buffers = 1 if single_buffer_codebook else 2
        # VMEM budget: double-buffered x / emb / idx tiles + resident codebook
        # operand(s) + (tm, K_pad) logits/iota/one-hot intermediates.
        vmem = (2 * tm * D_pad * x_bytes
                + 2 * tm * D_pad * out_bytes
                + 2 * tm * 4 * (1 if idx_1d else 128)
                + cb_buffers * cb_bytes
                + 3 * tm * K_pad * 4)
        vmem_limit = min(max(int(vmem * 1.25) + (4 << 20), 8 << 20), 100 << 20)

        def cb_spec():
            if single_buffer_codebook:
                # Never re-fetched: one buffer is enough; halves its VMEM.
                return pl.BlockSpec((K_pad, D_pad), lambda i: (0, 0),
                                    pipeline_mode=pl.Buffered(1))
            return pl.BlockSpec((K_pad, D_pad), lambda i: (0, 0))

        in_specs = [pl.BlockSpec((tm, D_pad), lambda i: (i, 0))]
        in_specs += [cb_spec() for _ in operands[1:]]

        if idx_1d:
            idx_shape = jax.ShapeDtypeStruct((N_pad,), jnp.int32)
            idx_spec = pl.BlockSpec((tm,), lambda i: (i,))
        else:
            idx_shape = jax.ShapeDtypeStruct((N_pad, 1), jnp.int32)
            idx_spec = pl.BlockSpec((tm, 1), lambda i: (i, 0))

        return pl.pallas_call(
            kernel,
            out_shape=(jax.ShapeDtypeStruct((N_pad, D_pad), out_dtype),
                       idx_shape),
            grid_spec=pltpu.PrefetchScalarGridSpec(
                num_scalar_prefetch=0,
                grid=grid,
                in_specs=in_specs,
                out_specs=[pl.BlockSpec((tm, D_pad), lambda i: (i, 0)),
                           idx_spec],
            ),
            compiler_params=pltpu.CompilerParams(
                dimension_semantics=("parallel",),
                vmem_limit_bytes=vmem_limit),
        )(*operands)

    try:
        emb, idx = run(single_buffer_codebook=True, idx_1d=True)
    except Exception:
        # Conservative fallback for JAX versions that reject Buffered(1)
        # single-buffering or 1-D blocked outputs: default double-buffering
        # and a (N_pad, 1) index layout.  Same results, slightly more VMEM.
        emb, idx = run(single_buffer_codebook=False, idx_1d=False)

    embed = emb[:N, :D].reshape(B, T, D)
    indices = idx.reshape(-1)[:N].reshape(B, T)
    return embed, indices


def make_softcode_weight(key, num_codes, code_dim):
    # matches: self.embedding.weight.data.uniform_(-1/num_codes, 1/num_codes)
    return jax.random.uniform(
        key, (num_codes, code_dim), dtype=jnp.float32,
        minval=-1.0 / num_codes, maxval=1.0 / num_codes)


if __name__ == "__main__":
    key = jax.random.PRNGKey(0)
    k_w, k_x = jax.random.split(key)

    B, T, D, K = 2, 8, 32, 16          # batch, seq, code_dim, num_codes
    weight = make_softcode_weight(k_w, K, D)
    inputs = jax.random.normal(k_x, (B, T, D), dtype=jnp.float32)

    embed, indices = softcode_forward(inputs, weight)
    jax.block_until_ready((embed, indices))

    # Pure-JAX reference.
    logits_ref = jnp.einsum("btd,kd->btk", inputs, weight,
                            precision=jax.lax.Precision.HIGHEST)
    idx_ref = jnp.argmax(logits_ref, axis=-1).astype(jnp.int32)

    assert indices.shape == (B, T) and indices.dtype == jnp.int32
    assert embed.shape == (B, T, D) and embed.dtype == inputs.dtype
    # Gathered rows must be the codebook rows selected by the kernel.
    assert jnp.allclose(embed, weight[indices], atol=1e-5)
    # Indices must match the reference except where the top-2 logits are
    # numerically tied (different-but-valid matmul rounding may flip those).
    top2 = jnp.sort(logits_ref, axis=-1)
    near_tie = (top2[..., -1] - top2[..., -2]) < 1e-5
    assert jnp.all((indices == idx_ref) | near_tie)

    # bf16 logits fast path (v6e/v7x): ordering may differ on near-ties, but
    # the gather must still return real (f32) codebook rows.
    emb16, idx16 = softcode_forward(inputs, weight, logits_in_bf16=True)
    jax.block_until_ready((emb16, idx16))
    assert jnp.all((idx16 >= 0) & (idx16 < K))
    assert jnp.allclose(emb16, weight[idx16], atol=1e-5)

    print("KERNEL_OK")
</pallas_src>

<mosaic_0001>
module attributes {stable_mosaic.version = 11 : i64} {
  func.func @_softcode_kernel_shared(%arg0: i32, %arg1: memref<128x128xf32, #tpu.memory_space<vmem>>, %arg2: memref<128x128xf32, #tpu.memory_space<vmem>>, %arg3: memref<128x128xf32, #tpu.memory_space<vmem>>, %arg4: memref<128x1xi32, #tpu.memory_space<vmem>>) attributes {dimension_semantics = [#tpu.dimension_semantics<parallel>], iteration_bounds = array<i64: 1>, scalar_prefetch = 0 : i64, scratch_operands = 0 : i64, tpu.core_type = #tpu.core_type<tc>, window_params = [{transform_indices = @transform_0, window_bounds = array<i64: 128, 128>}, {pipeline_mode = #tpu.pipeline_mode<synchronous>, transform_indices = @transform_1, window_bounds = array<i64: 128, 128>}, {transform_indices = @transform_2, window_bounds = array<i64: 128, 128>}, {transform_indices = @transform_3, window_bounds = array<i64: 128, 1>}]} {
    %c0 = arith.constant 0 : index
    %c0_0 = arith.constant 0 : index
    %0 = vector.load %arg1[%c0, %c0_0] : memref<128x128xf32, #tpu.memory_space<vmem>>, vector<128x128xf32>
    %c0_1 = arith.constant 0 : index
    %c0_2 = arith.constant 0 : index
    %1 = vector.load %arg2[%c0_1, %c0_2] : memref<128x128xf32, #tpu.memory_space<vmem>>, vector<128x128xf32>
    %cst = arith.constant dense<0.000000e+00> : vector<128x128xf32>
    %2 = tpu.matmul %0, %1, %cst {dimension_numbers = #tpu.dot_dimension_numbers<[1], [1], [0], [0], [0, 0, 1, 0], [], []>} : vector<128x128xf32>, vector<128x128xf32>, vector<128x128xf32> -> vector<128x128xf32>
    %3 = tpu.iota {dimensions = array<i32: 1>} : vector<1x128xi32>
    %c16_i32 = arith.constant 16 : i32
    %4 = vector.broadcast %c16_i32 : i32 to vector<1x128xi32>
    %5 = arith.cmpi slt, %3, %4 : vector<1x128xi32>
    %cst_3 = arith.constant 0.000000e+00 : f32
    %cst_4 = arith.constant -1.000000e+30 : f32
    %6 = vector.broadcast %cst_3 : f32 to vector<1x128xf32>
    %7 = vector.broadcast %cst_4 : f32 to vector<1x128xf32>
    %8 = arith.select %5, %6, %7 : vector<1x128xi1>, vector<1x128xf32>
    %9 = vector.broadcast %8 : vector<1x128xf32> to vector<128x128xf32>
    %10 = arith.addf %2, %9 : vector<128x128xf32>
    %11 = tpu.iota {dimensions = array<i32: 1>} : vector<128x128xi32>
    %cst_5 = arith.constant dense<0xFF800000> : vector<128xf32>
    %12 = vector.multi_reduction <maximumf>, %10, %cst_5 [1] : vector<128x128xf32> to vector<128xf32>
    %13 = vector.shape_cast %12 : vector<128xf32> to vector<128x1xf32>
    %14 = vector.broadcast %13 : vector<128x1xf32> to vector<128x128xf32>
    %15 = arith.cmpf oeq, %10, %14 : vector<128x128xf32>
    %c128_i32 = arith.constant 128 : i32
    %16 = vector.broadcast %c128_i32 : i32 to vector<128x128xi32>
    %17 = arith.select %15, %11, %16 : vector<128x128xi1>, vector<128x128xi32>
    %cst_6 = arith.constant dense<2147483647> : vector<128xi32>
    %18 = vector.multi_reduction <minsi>, %17, %cst_6 [1] : vector<128x128xi32> to vector<128xi32>
    %c15_i32 = arith.constant 15 : i32
    %19 = vector.broadcast %c15_i32 : i32 to vector<128xi32>
    %20 = arith.minsi %18, %19 : vector<128xi32>
    %21 = vector.shape_cast %20 : vector<128xi32> to vector<128x1xi32>
    %22 = vector.broadcast %21 : vector<128x1xi32> to vector<128x128xi32>
    %23 = arith.cmpi eq, %11, %22 : vector<128x128xi32>
    %24 = arith.extui %23 : vector<128x128xi1> to vector<128x128xi32>
    %25 = arith.sitofp %24 : vector<128x128xi32> to vector<128x128xf32>
    %c0_7 = arith.constant 0 : index
    %c0_8 = arith.constant 0 : index
    %26 = vector.load %arg2[%c0_7, %c0_8] : memref<128x128xf32, #tpu.memory_space<vmem>>, vector<128x128xf32>
    %cst_9 = arith.constant dense<0.000000e+00> : vector<128x128xf32>
    %27 = tpu.matmul %25, %26, %cst_9 {dimension_numbers = #tpu.dot_dimension_numbers<[1], [0], [0], [1], [0, 0, 1, 1], [], []>} : vector<128x128xf32>, vector<128x128xf32>, vector<128x128xf32> -> vector<128x128xf32>
    %c0_10 = arith.constant 0 : index
    %c0_11 = arith.constant 0 : index
    %28 = vector.load %arg3[%c0_10, %c0_11] : memref<128x128xf32, #tpu.memory_space<vmem>>, vector<128x128xf32>
    tpu.vector_store %arg3[%c0_10, %c0_11], %27 {strides = array<i32>} : memref<128x128xf32, #tpu.memory_space<vmem>>, vector<128x128xf32>,
    %29 = vector.shape_cast %20 : vector<128xi32> to vector<128x1xi32>
    %c0_12 = arith.constant 0 : index
    %c0_13 = arith.constant 0 : index
    %30 = vector.load %arg4[%c0_12, %c0_13] : memref<128x1xi32, #tpu.memory_space<vmem>>, vector<128x1xi32>
    tpu.vector_store %arg4[%c0_12, %c0_13], %29 {strides = array<i32>} : memref<128x1xi32, #tpu.memory_space<vmem>>, vector<128x1xi32>,
    return
  }
  func.func @transform_0(%arg0: i32) -> (i32, i32) {
    %c0_i32 = arith.constant 0 : i32
    %c0_i32_0 = arith.constant 0 : i32
    return %arg0, %c0_i32 : i32, i32
  }
  func.func @transform_1(%arg0: i32) -> (i32, i32) {
    %c0_i32 = arith.constant 0 : i32
    %c0_i32_0 = arith.constant 0 : i32
    %c0_i32_1 = arith.constant 0 : i32
    return %c0_i32, %c0_i32_0 : i32, i32
  }
  func.func @transform_2(%arg0: i32) -> (i32, i32) {
    %c0_i32 = arith.constant 0 : i32
    %c0_i32_0 = arith.constant 0 : i32
    return %arg0, %c0_i32 : i32, i32
  }
  func.func @transform_3(%arg0: i32) -> (i32, i32) {
    %c0_i32 = arith.constant 0 : i32
    %c0_i32_0 = arith.constant 0 : i32
    return %arg0, %c0_i32 : i32, i32
  }
}

</mosaic_0001>

<llo_original>
// kernel: tpu_custom_call.1
$region0: #{tpu_custom_call.1}
  #allocation0 [shape = 'u32[]', space=smem, size = 0x4, offset = 0x4, fixed_abs, tag = 'smem constant byte address 0x4 - core index']
  #allocation1 [shape = 'u32[144,128]{1,0:T(1,128)}', space=vmem, size = 0x12000, scoped, tag = 'internal scratch']
  %s0 = inlined_call_operand.hbm [shape: f32[128,128], index: 0, kind: input, shape index: {}]
  %s1 = inlined_call_operand.hbm [shape: f32[128,128], index: 1, kind: input, shape index: {}]
  %s2 = inlined_call_operand.hbm [shape: f32[128,128], index: 2, kind: output, shape index: {0}]
  %s3 = inlined_call_operand.vmem [shape: s32[128,1], index: 3, kind: output, shape index: {1}]
  %4 = xla_tuple %s2, %s3
  %s5 = sld [smem:[#allocation0]]
  $region34: #{tpu_custom_call.1} parent=0
    _
  %s7 = ssub.s32 1, %s5
  %s8 = scalar_select 0, %s7, %s5
  $region1: #{tpu_custom_call.1} parent=0
    #allocation2 [shape = 'u8[65536]{0}', space=vmem, size = 0x10000, scoped, tag = 'input window, operand 0, single buffered']
    #allocation3 [shape = 's32[1]{0}', space=sflag, size = 0x4, scoped, tag = 'scoped memory for tpu_custom_call.1']
    #allocation4 [shape = 's32[1]{0}', space=sflag, size = 0x4, scoped, tag = 'scoped memory for tpu_custom_call.1']
    #allocation5 [shape = 'u8[65536]{0}', space=vmem, size = 0x10000, scoped, tag = 'input window, operand 1, single buffered']
    #allocation6 [shape = 's32[1]{0}', space=sflag, size = 0x4, scoped, tag = 'scoped memory for tpu_custom_call.1']
    #allocation7 [shape = 'u8[65536]{0}', space=vmem, size = 0x10000, scoped, tag = 'output window, operand 0, single buffered']
    %9 = vsyncpa [#allocation3], 0
    %10 = vsyncpa [#allocation6], 0
    %11 = vsyncpa [#allocation4], 0
    // Predicated region
    $region2: #{tpu_custom_call.1} parent=1 // pred_check
      _
    $region3: #{tpu_custom_call.1} parent=1 // pred_check_branch
      %13 = sbr.rel (0) target = $region5
    $region4: #{tpu_custom_call.1} parent=1 // pred_region
      %s15 = ssub.s32 2048, 2048
      %16 = vsyncadd [#allocation3], %s15
      %s17 = sshll.u32 [#allocation2], 4
      %s18 = int_to_ptr.vmem [resolvable:$true] %s17
      %23 = dma.hbm_to_vmem [thread:$0]  %s0, 2048, %s18, [#allocation3], 128, 128, 8
    $region5: #{tpu_custom_call.1} parent=1 // pred_fallthru
      _
    // Predicated region
    $region6: #{tpu_custom_call.1} parent=1 // pred_check
      _
    $region7: #{tpu_custom_call.1} parent=1 // pred_check_branch
      %25 = sbr.rel (0) target = $region9
    $region8: #{tpu_custom_call.1} parent=1 // pred_region
      %s27 = ssub.s32 2048, 2048
      %28 = vsyncadd [#allocation6], %s27
      %s29 = sshll.u32 [#allocation5], 4
      %s30 = int_to_ptr.vmem [resolvable:$true] %s29
      %35 = dma.hbm_to_vmem [thread:$0]  %s1, 2048, %s30, [#allocation6], 128, 128, 8
    $region9: #{tpu_custom_call.1} parent=1 // pred_fallthru
      _
    // Predicated region
    $region10: #{tpu_custom_call.1} parent=1 // pred_check
      _
    $region11: #{tpu_custom_call.1} parent=1 // pred_check_branch
      %37 = sbr.rel (0) target = $region13
    $region12: #{tpu_custom_call.1} parent=1 // pred_region
      %38 = dma.done [#allocation3], 2048
    $region13: #{tpu_custom_call.1} parent=1 // pred_fallthru
      _
    // Predicated region
    $region14: #{tpu_custom_call.1} parent=1 // pred_check
      _
    $region15: #{tpu_custom_call.1} parent=1 // pred_check_branch
      %40 = sbr.rel (0) target = $region17
    $region16: #{tpu_custom_call.1} parent=1 // pred_region
      %41 = dma.done [#allocation6], 2048
    $region17: #{tpu_custom_call.1} parent=1 // pred_fallthru
      _
    %v42 = vld [vmem:[#allocation2] sm:$0xff]
    %v43 = vld [vmem:[#allocation2 + $0x8] sm:$0xff]
    %v44 = vld [vmem:[#allocation2 + $0x10] sm:$0xff]
    %v45 = vld [vmem:[#allocation2 + $0x18] sm:$0xff]
    %v46 = vld [vmem:[#allocation2 + $0x20] sm:$0xff]
    %v47 = vld [vmem:[#allocation2 + $0x28] sm:$0xff]
    %v48 = vld [vmem:[#allocation2 + $0x30] sm:$0xff]
    %v49 = vld [vmem:[#allocation2 + $0x38] sm:$0xff]
    %v50 = vld [vmem:[#allocation2 + $0x40] sm:$0xff]
    %v51 = vld [vmem:[#allocation2 + $0x48] sm:$0xff]
    %v52 = vld [vmem:[#allocation2 + $0x50] sm:$0xff]
    %v53 = vld [vmem:[#allocation2 + $0x58] sm:$0xff]
    %v54 = vld [vmem:[#allocation2 + $0x60] sm:$0xff]
    %v55 = vld [vmem:[#allocation2 + $0x68] sm:$0xff]
    %v56 = vld [vmem:[#allocation2 + $0x70] sm:$0xff]
    %v57 = vld [vmem:[#allocation2 + $0x78] sm:$0xff]
    %v58 = vld [vmem:[#allocation5] sm:$0xff]
    %v59 = vld [vmem:[#allocation5 + $0x8] sm:$0xff]
    %v60 = vld [vmem:[#allocation5 + $0x10] sm:$0xff]
    %v61 = vld [vmem:[#allocation5 + $0x18] sm:$0xff]
    %v62 = vld [vmem:[#allocation5 + $0x20] sm:$0xff]
    %v63 = vld [vmem:[#allocation5 + $0x28] sm:$0xff]
    %v64 = vld [vmem:[#allocation5 + $0x30] sm:$0xff]
    %v65 = vld [vmem:[#allocation5 + $0x38] sm:$0xff]
    %v66 = vld [vmem:[#allocation5 + $0x40] sm:$0xff]
    %v67 = vld [vmem:[#allocation5 + $0x48] sm:$0xff]
    %v68 = vld [vmem:[#allocation5 + $0x50] sm:$0xff]
    %v69 = vld [vmem:[#allocation5 + $0x58] sm:$0xff]
    %v70 = vld [vmem:[#allocation5 + $0x60] sm:$0xff]
    %v71 = vld [vmem:[#allocation5 + $0x68] sm:$0xff]
    %v72 = vld [vmem:[#allocation5 + $0x70] sm:$0xff]
    %v73 = vld [vmem:[#allocation5 + $0x78] sm:$0xff]
    %v74 = vlaneseq
    %v75 = vand.u32 %v74, 127
    %vm76 = vcmp.lt.s32.totalorder %v75, 16
    %v77 = vsel %vm76, 0.0, -1e+30
    %78 = vmatprep.subr.mxu0 0.0
    %79 = vmatpush1.xpose.msra.mxu0 %v58
    %80 = vmatprep.subr.mxu0 0.0
    %81 = vmatpush1.xpose.msra.mxu0 %v59
    %82 = vmatprep.subr.mxu0 0.0
    %83 = vmatpush1.xpose.msra.mxu0 %v60
    %84 = vmatprep.subr.mxu0 0.0
    %85 = vmatpush1.xpose.msra.mxu0 %v61
    %86 = vmatprep.subr.mxu0 0.0
    %87 = vmatpush1.xpose.msra.mxu0 %v62
    %88 = vmatprep.subr.mxu0 0.0
    %89 = vmatpush1.xpose.msra.mxu0 %v63
    %90 = vmatprep.subr.mxu0 0.0
    %91 = vmatpush1.xpose.msra.mxu0 %v64
    %92 = vmatprep.subr.mxu0 0.0
    %93 = vmatpush1.xpose.msra.mxu0 %v65
    %94 = vmatprep.subr.mxu0 0.0
    %95 = vmatpush1.xpose.msra.mxu0 %v66
    %96 = vmatprep.subr.mxu0 0.0
    %97 = vmatpush1.xpose.msra.mxu0 %v67
    %98 = vmatprep.subr.mxu0 0.0
    %99 = vmatpush1.xpose.msra.mxu0 %v68
    %100 = vmatprep.subr.mxu0 0.0
    %101 = vmatpush1.xpose.msra.mxu0 %v69
    %102 = vmatprep.subr.mxu0 0.0
    %103 = vmatpush1.xpose.msra.mxu0 %v70
    %104 = vmatprep.subr.mxu0 0.0
    %105 = vmatpush1.xpose.msra.mxu0 %v71
    %106 = vmatprep.subr.mxu0 0.0
    %107 = vmatpush1.xpose.msra.mxu0 %v72
    %108 = vmatprep.subr.mxu0 0.0
    %109 = vmatpush1.xpose.msra.mxu0 %v73
    %110 = vmatprep.subr.mxu0 0.0
    %111 = vmatpush1.xpose.msra.mxu0 0.0
    %112 = vmatprep.subr.mxu0 0.0
    %113 = vmatpush1.xpose.msra.mxu0 0.0
    %114 = vmatprep.subr.mxu0 0.0
    %115 = vmatpush1.xpose.msra.mxu0 0.0
    %116 = vmatprep.subr.mxu0 0.0
    %117 = vmatpush1.xpose.msra.mxu0 0.0
    %118 = vmatprep.subr.mxu0 0.0
    %119 = vmatpush1.xpose.msra.mxu0 0.0
    %120 = vmatprep.subr.mxu0 0.0
    %121 = vmatpush1.xpose.msra.mxu0 0.0
    %122 = vmatprep.subr.mxu0 0.0
    %123 = vmatpush1.xpose.msra.mxu0 0.0
    %124 = vmatprep.subr.mxu0 0.0
    %125 = vmatpush1.xpose.msra.mxu0 0.0
    %126 = vmatprep.subr.mxu0 0.0
    %127 = vmatpush1.xpose.msra.mxu0 0.0
    %128 = vmatprep.subr.mxu0 0.0
    %129 = vmatpush1.xpose.msra.mxu0 0.0
    %130 = vmatprep.subr.mxu0 0.0
    %131 = vmatpush1.xpose.msra.mxu0 0.0
    %132 = vmatprep.subr.mxu0 0.0
    %133 = vmatpush1.xpose.msra.mxu0 0.0
    %134 = vmatprep.subr.mxu0 0.0
    %135 = vmatpush1.xpose.msra.mxu0 0.0
    %136 = vmatprep.subr.mxu0 0.0
    %137 = vmatpush1.xpose.msra.mxu0 0.0
    %138 = vmatprep.subr.mxu0 0.0
    %139 = vmatpush1.xpose.msra.mxu0 0.0
    %140 = vmatprep.subr.mxu0 0.0
    %141 = vmatpush1.xpose.msra.mxu0 0.0
    %142 = vmatprep.mubr.f32.mxu0 0.0
    %143 = vmatmul.mubr.f32.gmra.mrb[0].mxu0 %v42
    %v144 = vpop.f32.mrb[0].mxu0
    %v145 = vadd.f32 %v77, %v144
    %v146 = vpop.f32.mrb[0].mxu0
    %147 = vmatprep.mubr.f32.mxu0 0.0
    %148 = vmatmul.mubr.f32.gmra.mrb[0].mxu0 %v43
    %v149 = vpop.f32.mrb[0].mxu0
    %v150 = vadd.f32 %v77, %v149
    %v151 = vpop.f32.mrb[0].mxu0
    %152 = vmatprep.mubr.f32.mxu0 0.0
    %153 = vmatmul.mubr.f32.gmra.mrb[0].mxu0 %v44
    %v154 = vpop.f32.mrb[0].mxu0
    %v155 = vadd.f32 %v77, %v154
    %v156 = vpop.f32.mrb[0].mxu0
    %157 = vmatprep.mubr.f32.mxu0 0.0
    %158 = vmatmul.mubr.f32.gmra.mrb[0].mxu0 %v45
    %v159 = vpop.f32.mrb[0].mxu0
    %v160 = vadd.f32 %v77, %v159
    %v161 = vpop.f32.mrb[0].mxu0
    %162 = vmatprep.mubr.f32.mxu0 0.0
    %163 = vmatmul.mubr.f32.gmra.mrb[0].mxu0 %v46
    %v164 = vpop.f32.mrb[0].mxu0
    %v165 = vadd.f32 %v77, %v164
    %v166 = vpop.f32.mrb[0].mxu0
    %167 = vmatprep.mubr.f32.mxu0 0.0
    %168 = vmatmul.mubr.f32.gmra.mrb[0].mxu0 %v47
    %v169 = vpop.f32.mrb[0].mxu0
    %v170 = vadd.f32 %v77, %v169
    %v171 = vpop.f32.mrb[0].mxu0
    %172 = vmatprep.mubr.f32.mxu0 0.0
    %173 = vmatmul.mubr.f32.gmra.mrb[0].mxu0 %v48
    %v174 = vpop.f32.mrb[0].mxu0
    %v175 = vadd.f32 %v77, %v174
    %v176 = vpop.f32.mrb[0].mxu0
    %177 = vmatprep.mubr.f32.mxu0 0.0
    %178 = vmatmul.mubr.f32.gmra.mrb[0].mxu0 %v49
    %v179 = vpop.f32.mrb[0].mxu0
    %v180 = vadd.f32 %v77, %v179
    %v181 = vpop.f32.mrb[0].mxu0
    %182 = vmatprep.mubr.f32.mxu0 0.0
    %183 = vmatmul.mubr.f32.gmra.mrb[0].mxu0 %v50
    %v184 = vpop.f32.mrb[0].mxu0
    %v185 = vadd.f32 %v77, %v184
    %v186 = vpop.f32.mrb[0].mxu0
    %187 = vmatprep.mubr.f32.mxu0 0.0
    %188 = vmatmul.mubr.f32.gmra.mrb[0].mxu0 %v51
    %v189 = vpop.f32.mrb[0].mxu0
    %v190 = vadd.f32 %v77, %v189
    %v191 = vpop.f32.mrb[0].mxu0
    %192 = vmatprep.mubr.f32.mxu0 0.0
    %193 = vmatmul.mubr.f32.gmra.mrb[0].mxu0 %v52
    %v194 = vpop.f32.mrb[0].mxu0
    %v195 = vadd.f32 %v77, %v194
    %v196 = vpop.f32.mrb[0].mxu0
    %197 = vmatprep.mubr.f32.mxu0 0.0
    %198 = vmatmul.mubr.f32.gmra.mrb[0].mxu0 %v53
    %v199 = vpop.f32.mrb[0].mxu0
    %v200 = vadd.f32 %v77, %v199
    %v201 = vpop.f32.mrb[0].mxu0
    %202 = vmatprep.mubr.f32.mxu0 0.0
    %203 = vmatmul.mubr.f32.gmra.mrb[0].mxu0 %v54
    %v204 = vpop.f32.mrb[0].mxu0
    %v205 = vadd.f32 %v77, %v204
    %v206 = vpop.f32.mrb[0].mxu0
    %207 = vmatprep.mubr.f32.mxu0 0.0
    %208 = vmatmul.mubr.f32.gmra.mrb[0].mxu0 %v55
    %v209 = vpop.f32.mrb[0].mxu0
    %v210 = vadd.f32 %v77, %v209
    %v211 = vpop.f32.mrb[0].mxu0
    %212 = vmatprep.mubr.f32.mxu0 0.0
    %213 = vmatmul.mubr.f32.gmra.mrb[0].mxu0 %v56
    %v214 = vpop.f32.mrb[0].mxu0
    %v215 = vadd.f32 %v77, %v214
    %v216 = vpop.f32.mrb[0].mxu0
    %217 = vmatprep.mubr.f32.mxu0 0.0
    %218 = vmatmul.mubr.f32.gmra.mrb[0].mxu0 %v57
    %v219 = vpop.f32.mrb[0].mxu0
    %v220 = vadd.f32 %v77, %v219
    %v221 = vpop.f32.mrb[0].mxu0
    %222 = vdwg.mxu0
    %223 = vmax.xlane.f32.xlu0 %v145
    %v224 = vpop.xlane.xlu0 %223
    %225 = vmax.xlane.f32.xlu0 %v150
    %v226 = vpop.xlane.xlu0 %225
    %227 = vmax.xlane.f32.xlu0 %v155
    %v228 = vpop.xlane.xlu0 %227
    %229 = vmax.xlane.f32.xlu0 %v160
    %v230 = vpop.xlane.xlu0 %229
    %231 = vmax.xlane.f32.xlu0 %v165
    %v232 = vpop.xlane.xlu0 %231
    %233 = vmax.xlane.f32.xlu0 %v170
    %v234 = vpop.xlane.xlu0 %233
    %235 = vmax.xlane.f32.xlu0 %v175
    %v236 = vpop.xlane.xlu0 %235
    %237 = vmax.xlane.f32.xlu0 %v180
    %v238 = vpop.xlane.xlu0 %237
    %239 = vmax.xlane.f32.xlu0 %v185
    %v240 = vpop.xlane.xlu0 %239
    %241 = vmax.xlane.f32.xlu0 %v190
    %v242 = vpop.xlane.xlu0 %241
    %243 = vmax.xlane.f32.xlu0 %v195
    %v244 = vpop.xlane.xlu0 %243
    %245 = vmax.xlane.f32.xlu0 %v200
    %v246 = vpop.xlane.xlu0 %245
    %247 = vmax.xlane.f32.xlu0 %v205
    %v248 = vpop.xlane.xlu0 %247
    %249 = vmax.xlane.f32.xlu0 %v210
    %v250 = vpop.xlane.xlu0 %249
    %251 = vmax.xlane.f32.xlu0 %v215
    %v252 = vpop.xlane.xlu0 %251
    %253 = vmax.xlane.f32.xlu0 %v220
    %v254 = vpop.xlane.xlu0 %253
    %vm255 = vcmp.eq.f32.partialorder %v145, %v224
    %vm256 = vcmp.eq.f32.partialorder %v150, %v226
    %vm257 = vcmp.eq.f32.partialorder %v155, %v228
    %vm258 = vcmp.eq.f32.partialorder %v160, %v230
    %vm259 = vcmp.eq.f32.partialorder %v165, %v232
    %vm260 = vcmp.eq.f32.partialorder %v170, %v234
    %vm261 = vcmp.eq.f32.partialorder %v175, %v236
    %vm262 = vcmp.eq.f32.partialorder %v180, %v238
    %vm263 = vcmp.eq.f32.partialorder %v185, %v240
    %vm264 = vcmp.eq.f32.partialorder %v190, %v242
    %vm265 = vcmp.eq.f32.partialorder %v195, %v244
    %vm266 = vcmp.eq.f32.partialorder %v200, %v246
    %vm267 = vcmp.eq.f32.partialorder %v205, %v248
    %vm268 = vcmp.eq.f32.partialorder %v210, %v250
    %vm269 = vcmp.eq.f32.partialorder %v215, %v252
    %vm270 = vcmp.eq.f32.partialorder %v220, %v254
    %v271 = vsel %vm255, %v75, 128
    %v272 = vsel %vm256, %v75, 128
    %v273 = vsel %vm257, %v75, 128
    %v274 = vsel %vm258, %v75, 128
    %v275 = vsel %vm259, %v75, 128
    %v276 = vsel %vm260, %v75, 128
    %v277 = vsel %vm261, %v75, 128
    %v278 = vsel %vm262, %v75, 128
    %v279 = vsel %vm263, %v75, 128
    %v280 = vsel %vm264, %v75, 128
    %v281 = vsel %vm265, %v75, 128
    %v282 = vsel %vm266, %v75, 128
    %v283 = vsel %vm267, %v75, 128
    %v284 = vsel %vm268, %v75, 128
    %v285 = vsel %vm269, %v75, 128
    %v286 = vsel %vm270, %v75, 128
    %v287 = vand.u32 %v271, 65535
    %v288 = vshra.s32 %v271, 16
    %v289 = vcvt.s32.f32 %v287
    %v290 = vcvt.s32.f32 %v288
    %291 = vmin.xlane.f32.xlu0 %v290
    %v292 = vpop.xlane.xlu0 %291
    %vm293 = vcmp.eq.f32.partialorder %v290, %v292
    %v294 = vsel %vm293, %v289, inf
    %295 = vmin.xlane.f32.xlu0 %v294
    %v296 = vpop.xlane.xlu0 %295
    %v297 = vcvt.f32.s32 %v296
    %v298 = vcvt.f32.s32 %v292
    %v299 = vshll.u32 %v298, 16
    %v300 = vadd.s32 %v299, %v297
    %v301 = vand.u32 %v272, 65535
    %v302 = vshra.s32 %v272, 16
    %v303 = vcvt.s32.f32 %v301
    %v304 = vcvt.s32.f32 %v302
    %305 = vmin.xlane.f32.xlu0 %v304
    %v306 = vpop.xlane.xlu0 %305
    %vm307 = vcmp.eq.f32.partialorder %v304, %v306
    %v308 = vsel %vm307, %v303, inf
    %309 = vmin.xlane.f32.xlu0 %v308
    %v310 = vpop.xlane.xlu0 %309
    %v311 = vcvt.f32.s32 %v310
    %v312 = vcvt.f32.s32 %v306
    %v313 = vshll.u32 %v312, 16
    %v314 = vadd.s32 %v313, %v311
    %v315 = vand.u32 %v273, 65535
    %v316 = vshra.s32 %v273, 16
    %v317 = vcvt.s32.f32 %v315
    %v318 = vcvt.s32.f32 %v316
    %319 = vmin.xlane.f32.xlu0 %v318
    %v320 = vpop.xlane.xlu0 %319
    %vm321 = vcmp.eq.f32.partialorder %v318, %v320
    %v322 = vsel %vm321, %v317, inf
    %323 = vmin.xlane.f32.xlu0 %v322
    %v324 = vpop.xlane.xlu0 %323
    %v325 = vcvt.f32.s32 %v324
    %v326 = vcvt.f32.s32 %v320
    %v327 = vshll.u32 %v326, 16
    %v328 = vadd.s32 %v327, %v325
    %v329 = vand.u32 %v274, 65535
    %v330 = vshra.s32 %v274, 16
    %v331 = vcvt.s32.f32 %v329
    %v332 = vcvt.s32.f32 %v330
    %333 = vmin.xlane.f32.xlu0 %v332
    %v334 = vpop.xlane.xlu0 %333
    %vm335 = vcmp.eq.f32.partialorder %v332, %v334
    %v336 = vsel %vm335, %v331, inf
    %337 = vmin.xlane.f32.xlu0 %v336
    %v338 = vpop.xlane.xlu0 %337
    %v339 = vcvt.f32.s32 %v338
    %v340 = vcvt.f32.s32 %v334
    %v341 = vshll.u32 %v340, 16
    %v342 = vadd.s32 %v341, %v339
    %v343 = vand.u32 %v275, 65535
    %v344 = vshra.s32 %v275, 16
    %v345 = vcvt.s32.f32 %v343
    %v346 = vcvt.s32.f32 %v344
    %347 = vmin.xlane.f32.xlu0 %v346
    %v348 = vpop.xlane.xlu0 %347
    %vm349 = vcmp.eq.f32.partialorder %v346, %v348
    %v350 = vsel %vm349, %v345, inf
    %351 = vmin.xlane.f32.xlu0 %v350
    %v352 = vpop.xlane.xlu0 %351
    %v353 = vcvt.f32.s32 %v352
    %v354 = vcvt.f32.s32 %v348
    %v355 = vshll.u32 %v354, 16
    %v356 = vadd.s32 %v355, %v353
    %v357 = vand.u32 %v276, 65535
    %v358 = vshra.s32 %v276, 16
    %v359 = vcvt.s32.f32 %v357
    %v360 = vcvt.s32.f32 %v358
    %361 = vmin.xlane.f32.xlu0 %v360
    %v362 = vpop.xlane.xlu0 %361
    %vm363 = vcmp.eq.f32.partialorder %v360, %v362
    %v364 = vsel %vm363, %v359, inf
    %365 = vmin.xlane.f32.xlu0 %v364
    %v366 = vpop.xlane.xlu0 %365
    %v367 = vcvt.f32.s32 %v366
    %v368 = vcvt.f32.s32 %v362
    %v369 = vshll.u32 %v368, 16
    %v370 = vadd.s32 %v369, %v367
    %v371 = vand.u32 %v277, 65535
    %v372 = vshra.s32 %v277, 16
    %v373 = vcvt.s32.f32 %v371
    %v374 = vcvt.s32.f32 %v372
    %375 = vmin.xlane.f32.xlu0 %v374
    %v376 = vpop.xlane.xlu0 %375
    %vm377 = vcmp.eq.f32.partialorder %v374, %v376
    %v378 = vsel %vm377, %v373, inf
    %379 = vmin.xlane.f32.xlu0 %v378
    %v380 = vpop.xlane.xlu0 %379
    %v381 = vcvt.f32.s32 %v380
    %v382 = vcvt.f32.s32 %v376
    %v383 = vshll.u32 %v382, 16
    %v384 = vadd.s32 %v383, %v381
    %v385 = vand.u32 %v278, 65535
    %v386 = vshra.s32 %v278, 16
    %v387 = vcvt.s32.f32 %v385
    %v388 = vcvt.s32.f32 %v386
    %389 = vmin.xlane.f32.xlu0 %v388
    %v390 = vpop.xlane.xlu0 %389
    %vm391 = vcmp.eq.f32.partialorder %v388, %v390
    %v392 = vsel %vm391, %v387, inf
    %393 = vmin.xlane.f32.xlu0 %v392
    %v394 = vpop.xlane.xlu0 %393
    %v395 = vcvt.f32.s32 %v394
    %v396 = vcvt.f32.s32 %v390
    %v397 = vshll.u32 %v396, 16
    %v398 = vadd.s32 %v397, %v395
    %v399 = vand.u32 %v279, 65535
    %v400 = vshra.s32 %v279, 16
    %v401 = vcvt.s32.f32 %v399
    %v402 = vcvt.s32.f32 %v400
    %403 = vmin.xlane.f32.xlu0 %v402
    %v404 = vpop.xlane.xlu0 %403
    %vm405 = vcmp.eq.f32.partialorder %v402, %v404
    %v406 = vsel %vm405, %v401, inf
    %407 = vmin.xlane.f32.xlu0 %v406
    %v408 = vpop.xlane.xlu0 %407
    %v409 = vcvt.f32.s32 %v408
    %v410 = vcvt.f32.s32 %v404
    %v411 = vshll.u32 %v410, 16
    %v412 = vadd.s32 %v411, %v409
    %v413 = vand.u32 %v280, 65535
    %v414 = vshra.s32 %v280, 16
    %v415 = vcvt.s32.f32 %v413
    %v416 = vcvt.s32.f32 %v414
    %417 = vmin.xlane.f32.xlu0 %v416
    %v418 = vpop.xlane.xlu0 %417
    %vm419 = vcmp.eq.f32.partialorder %v416, %v418
    %v420 = vsel %vm419, %v415, inf
    %421 = vmin.xlane.f32.xlu0 %v420
    %v422 = vpop.xlane.xlu0 %421
    %v423 = vcvt.f32.s32 %v422
    %v424 = vcvt.f32.s32 %v418
    %v425 = vshll.u32 %v424, 16
    %v426 = vadd.s32 %v425, %v423
    %v427 = vand.u32 %v281, 65535
    %v428 = vshra.s32 %v281, 16
    %v429 = vcvt.s32.f32 %v427
    %v430 = vcvt.s32.f32 %v428
    %431 = vmin.xlane.f32.xlu0 %v430
    %v432 = vpop.xlane.xlu0 %431
    %vm433 = vcmp.eq.f32.partialorder %v430, %v432
    %v434 = vsel %vm433, %v429, inf
    %435 = vmin.xlane.f32.xlu0 %v434
    %v436 = vpop.xlane.xlu0 %435
    %v437 = vcvt.f32.s32 %v436
    %v438 = vcvt.f32.s32 %v432
    %v439 = vshll.u32 %v438, 16
    %v440 = vadd.s32 %v439, %v437
    %v441 = vand.u32 %v282, 65535
    %v442 = vshra.s32 %v282, 16
    %v443 = vcvt.s32.f32 %v441
    %v444 = vcvt.s32.f32 %v442
    %445 = vmin.xlane.f32.xlu0 %v444
    %v446 = vpop.xlane.xlu0 %445
    %vm447 = vcmp.eq.f32.partialorder %v444, %v446
    %v448 = vsel %vm447, %v443, inf
    %449 = vmin.xlane.f32.xlu0 %v448
    %v450 = vpop.xlane.xlu0 %449
    %v451 = vcvt.f32.s32 %v450
    %v452 = vcvt.f32.s32 %v446
    %v453 = vshll.u32 %v452, 16
    %v454 = vadd.s32 %v453, %v451
    %v455 = vand.u32 %v283, 65535
    %v456 = vshra.s32 %v283, 16
    %v457 = vcvt.s32.f32 %v455
    %v458 = vcvt.s32.f32 %v456
    %459 = vmin.xlane.f32.xlu0 %v458
    %v460 = vpop.xlane.xlu0 %459
    %vm461 = vcmp.eq.f32.partialorder %v458, %v460
    %v462 = vsel %vm461, %v457, inf
    %463 = vmin.xlane.f32.xlu0 %v462
    %v464 = vpop.xlane.xlu0 %463
    %v465 = vcvt.f32.s32 %v464
    %v466 = vcvt.f32.s32 %v460
    %v467 = vshll.u32 %v466, 16
    %v468 = vadd.s32 %v467, %v465
    %v469 = vand.u32 %v284, 65535
    %v470 = vshra.s32 %v284, 16
    %v471 = vcvt.s32.f32 %v469
    %v472 = vcvt.s32.f32 %v470
    %473 = vmin.xlane.f32.xlu0 %v472
    %v474 = vpop.xlane.xlu0 %473
    %vm475 = vcmp.eq.f32.partialorder %v472, %v474
    %v476 = vsel %vm475, %v471, inf
    %477 = vmin.xlane.f32.xlu0 %v476
    %v478 = vpop.xlane.xlu0 %477
    %v479 = vcvt.f32.s32 %v478
    %v480 = vcvt.f32.s32 %v474
    %v481 = vshll.u32 %v480, 16
    %v482 = vadd.s32 %v481, %v479
    %v483 = vand.u32 %v285, 65535
    %v484 = vshra.s32 %v285, 16
    %v485 = vcvt.s32.f32 %v483
    %v486 = vcvt.s32.f32 %v484
    %487 = vmin.xlane.f32.xlu0 %v486
    %v488 = vpop.xlane.xlu0 %487
    %vm489 = vcmp.eq.f32.partialorder %v486, %v488
    %v490 = vsel %vm489, %v485, inf
    %491 = vmin.xlane.f32.xlu0 %v490
    %v492 = vpop.xlane.xlu0 %491
    %v493 = vcvt.f32.s32 %v492
    %v494 = vcvt.f32.s32 %v488
    %v495 = vshll.u32 %v494, 16
    %v496 = vadd.s32 %v495, %v493
    %v497 = vand.u32 %v286, 65535
    %v498 = vshra.s32 %v286, 16
    %v499 = vcvt.s32.f32 %v497
    %v500 = vcvt.s32.f32 %v498
    %501 = vmin.xlane.f32.xlu0 %v500
    %v502 = vpop.xlane.xlu0 %501
    %vm503 = vcmp.eq.f32.partialorder %v500, %v502
    %v504 = vsel %vm503, %v499, inf
    %505 = vmin.xlane.f32.xlu0 %v504
    %v506 = vpop.xlane.xlu0 %505
    %v507 = vcvt.f32.s32 %v506
    %v508 = vcvt.f32.s32 %v502
    %v509 = vshll.u32 %v508, 16
    %v510 = vadd.s32 %v509, %v507
    %vm511 = vcmp.lt.s32.totalorder %v300, 15
    %v512 = vsel %vm511, %v300, 15
    %vm513 = vcmp.lt.s32.totalorder %v314, 15
    %v514 = vsel %vm513, %v314, 15
    %vm515 = vcmp.lt.s32.totalorder %v328, 15
    %v516 = vsel %vm515, %v328, 15
    %vm517 = vcmp.lt.s32.totalorder %v342, 15
    %v518 = vsel %vm517, %v342, 15
    %vm519 = vcmp.lt.s32.totalorder %v356, 15
    %v520 = vsel %vm519, %v356, 15
    %vm521 = vcmp.lt.s32.totalorder %v370, 15
    %v522 = vsel %vm521, %v370, 15
    %vm523 = vcmp.lt.s32.totalorder %v384, 15
    %v524 = vsel %vm523, %v384, 15
    %vm525 = vcmp.lt.s32.totalorder %v398, 15
    %v526 = vsel %vm525, %v398, 15
    %vm527 = vcmp.lt.s32.totalorder %v412, 15
    %v528 = vsel %vm527, %v412, 15
    %vm529 = vcmp.lt.s32.totalorder %v426, 15
    %v530 = vsel %vm529, %v426, 15
    %vm531 = vcmp.lt.s32.totalorder %v440, 15
    %v532 = vsel %vm531, %v440, 15
    %vm533 = vcmp.lt.s32.totalorder %v454, 15
    %v534 = vsel %vm533, %v454, 15
    %vm535 = vcmp.lt.s32.totalorder %v468, 15
    %v536 = vsel %vm535, %v468, 15
    %vm537 = vcmp.lt.s32.totalorder %v482, 15
    %v538 = vsel %vm537, %v482, 15
    %vm539 = vcmp.lt.s32.totalorder %v496, 15
    %v540 = vsel %vm539, %v496, 15
    %vm541 = vcmp.lt.s32.totalorder %v510, 15
    %v542 = vsel %vm541, %v510, 15
    %vm543 = vcmp.eq.s32.totalorder %v75, %v512
    %vm544 = vcmp.eq.s32.totalorder %v75, %v514
    %vm545 = vcmp.eq.s32.totalorder %v75, %v516
    %vm546 = vcmp.eq.s32.totalorder %v75, %v518
    %vm547 = vcmp.eq.s32.totalorder %v75, %v520
    %vm548 = vcmp.eq.s32.totalorder %v75, %v522
    %vm549 = vcmp.eq.s32.totalorder %v75, %v524
    %vm550 = vcmp.eq.s32.totalorder %v75, %v526
    %vm551 = vcmp.eq.s32.totalorder %v75, %v528
    %vm552 = vcmp.eq.s32.totalorder %v75, %v530
    %vm553 = vcmp.eq.s32.totalorder %v75, %v532
    %vm554 = vcmp.eq.s32.totalorder %v75, %v534
    %vm555 = vcmp.eq.s32.totalorder %v75, %v536
    %vm556 = vcmp.eq.s32.totalorder %v75, %v538
    %vm557 = vcmp.eq.s32.totalorder %v75, %v540
    %vm558 = vcmp.eq.s32.totalorder %v75, %v542
    %v559 = vsel %vm543, 1, 0
    %v560 = vsel %vm544, 1, 0
    %v561 = vsel %vm545, 1, 0
    %v562 = vsel %vm546, 1, 0
    %v563 = vsel %vm547, 1, 0
    %v564 = vsel %vm548, 1, 0
    %v565 = vsel %vm549, 1, 0
    %v566 = vsel %vm550, 1, 0
    %v567 = vsel %vm551, 1, 0
    %v568 = vsel %vm552, 1, 0
    %v569 = vsel %vm553, 1, 0
    %v570 = vsel %vm554, 1, 0
    %v571 = vsel %vm555, 1, 0
    %v572 = vsel %vm556, 1, 0
    %v573 = vsel %vm557, 1, 0
    %v574 = vsel %vm558, 1, 0
    %v575 = vcvt.s32.f32 %v559
    %v576 = vcvt.s32.f32 %v560
    %v577 = vcvt.s32.f32 %v561
    %v578 = vcvt.s32.f32 %v562
    %v579 = vcvt.s32.f32 %v563
    %v580 = vcvt.s32.f32 %v564
    %v581 = vcvt.s32.f32 %v565
    %v582 = vcvt.s32.f32 %v566
    %v583 = vcvt.s32.f32 %v567
    %v584 = vcvt.s32.f32 %v568
    %v585 = vcvt.s32.f32 %v569
    %v586 = vcvt.s32.f32 %v570
    %v587 = vcvt.s32.f32 %v571
    %v588 = vcvt.s32.f32 %v572
    %v589 = vcvt.s32.f32 %v573
    %v590 = vcvt.s32.f32 %v574
    %591 = vmatprep.subr.mxu0 0.0
    %592 = vmatpush1.msra.mxu0 %v58
    %593 = vmatprep.subr.mxu0 0.0
    %594 = vmatpush1.msra.mxu0 %v59
    %595 = vmatprep.subr.mxu0 0.0
    %596 = vmatpush1.msra.mxu0 %v60
    %597 = vmatprep.subr.mxu0 0.0
    %598 = vmatpush1.msra.mxu0 %v61
    %599 = vmatprep.subr.mxu0 0.0
    %600 = vmatpush1.msra.mxu0 %v62
    %601 = vmatprep.subr.mxu0 0.0
    %602 = vmatpush1.msra.mxu0 %v63
    %603 = vmatprep.subr.mxu0 0.0
    %604 = vmatpush1.msra.mxu0 %v64
    %605 = vmatprep.subr.mxu0 0.0
    %606 = vmatpush1.msra.mxu0 %v65
    %607 = vmatprep.subr.mxu0 0.0
    %608 = vmatpush1.msra.mxu0 %v66
    %609 = vmatprep.subr.mxu0 0.0
    %610 = vmatpush1.msra.mxu0 %v67
    %611 = vmatprep.subr.mxu0 0.0
    %612 = vmatpush1.msra.mxu0 %v68
    %613 = vmatprep.subr.mxu0 0.0
    %614 = vmatpush1.msra.mxu0 %v69
    %615 = vmatprep.subr.mxu0 0.0
    %616 = vmatpush1.msra.mxu0 %v70
    %617 = vmatprep.subr.mxu0 0.0
    %618 = vmatpush1.msra.mxu0 %v71
    %619 = vmatprep.subr.mxu0 0.0
    %620 = vmatpush1.msra.mxu0 %v72
    %621 = vmatprep.subr.mxu0 0.0
    %622 = vmatpush1.msra.mxu0 %v73
    %623 = vmatprep.subr.mxu0 0.0
    %624 = vmatpush1.msra.mxu0 0.0
    %625 = vmatprep.subr.mxu0 0.0
    %626 = vmatpush1.msra.mxu0 0.0
    %627 = vmatprep.subr.mxu0 0.0
    %628 = vmatpush1.msra.mxu0 0.0
    %629 = vmatprep.subr.mxu0 0.0
    %630 = vmatpush1.msra.mxu0 0.0
    %631 = vmatprep.subr.mxu0 0.0
    %632 = vmatpush1.msra.mxu0 0.0
    %633 = vmatprep.subr.mxu0 0.0
    %634 = vmatpush1.msra.mxu0 0.0
    %635 = vmatprep.subr.mxu0 0.0
    %636 = vmatpush1.msra.mxu0 0.0
    %637 = vmatprep.subr.mxu0 0.0
    %638 = vmatpush1.msra.mxu0 0.0
    %639 = vmatprep.subr.mxu0 0.0
    %640 = vmatpush1.msra.mxu0 0.0
    %641 = vmatprep.subr.mxu0 0.0
    %642 = vmatpush1.msra.mxu0 0.0
    %643 = vmatprep.subr.mxu0 0.0
    %644 = vmatpush1.msra.mxu0 0.0
    %645 = vmatprep.subr.mxu0 0.0
    %646 = vmatpush1.msra.mxu0 0.0
    %647 = vmatprep.subr.mxu0 0.0
    %648 = vmatpush1.msra.mxu0 0.0
    %649 = vmatprep.subr.mxu0 0.0
    %650 = vmatpush1.msra.mxu0 0.0
    %651 = vmatprep.subr.mxu0 0.0
    %652 = vmatpush1.msra.mxu0 0.0
    %653 = vmatprep.subr.mxu0 0.0
    %654 = vmatpush1.msra.mxu0 0.0
    %655 = vmatprep.mubr.f32.mxu0 0.0
    %656 = vmatmul.mubr.f32.gmra.mrb[0].mxu0 %v575
    %v657 = vpop.f32.mrb[0].mxu0
    %v658 = vadd.f32 0.0, %v657
    %v659 = vpop.f32.mrb[0].mxu0
    %660 = vmatprep.mubr.f32.mxu0 0.0
    %661 = vmatmul.mubr.f32.gmra.mrb[0].mxu0 %v576
    %v662 = vpop.f32.mrb[0].mxu0
    %v663 = vadd.f32 0.0, %v662
    %v664 = vpop.f32.mrb[0].mxu0
    %665 = vmatprep.mubr.f32.mxu0 0.0
    %666 = vmatmul.mubr.f32.gmra.mrb[0].mxu0 %v577
    %v667 = vpop.f32.mrb[0].mxu0
    %v668 = vadd.f32 0.0, %v667
    %v669 = vpop.f32.mrb[0].mxu0
    %670 = vmatprep.mubr.f32.mxu0 0.0
    %671 = vmatmul.mubr.f32.gmra.mrb[0].mxu0 %v578
    %v672 = vpop.f32.mrb[0].mxu0
    %v673 = vadd.f32 0.0, %v672
    %v674 = vpop.f32.mrb[0].mxu0
    %675 = vmatprep.mubr.f32.mxu0 0.0
    %676 = vmatmul.mubr.f32.gmra.mrb[0].mxu0 %v579
    %v677 = vpop.f32.mrb[0].mxu0
    %v678 = vadd.f32 0.0, %v677
    %v679 = vpop.f32.mrb[0].mxu0
    %680 = vmatprep.mubr.f32.mxu0 0.0
    %681 = vmatmul.mubr.f32.gmra.mrb[0].mxu0 %v580
    %v682 = vpop.f32.mrb[0].mxu0
    %v683 = vadd.f32 0.0, %v682
    %v684 = vpop.f32.mrb[0].mxu0
    %685 = vmatprep.mubr.f32.mxu0 0.0
    %686 = vmatmul.mubr.f32.gmra.mrb[0].mxu0 %v581
    %v687 = vpop.f32.mrb[0].mxu0
    %v688 = vadd.f32 0.0, %v687
    %v689 = vpop.f32.mrb[0].mxu0
    %690 = vmatprep.mubr.f32.mxu0 0.0
    %691 = vmatmul.mubr.f32.gmra.mrb[0].mxu0 %v582
    %v692 = vpop.f32.mrb[0].mxu0
    %v693 = vadd.f32 0.0, %v692
    %v694 = vpop.f32.mrb[0].mxu0
    %695 = vmatprep.mubr.f32.mxu0 0.0
    %696 = vmatmul.mubr.f32.gmra.mrb[0].mxu0 %v583
    %v697 = vpop.f32.mrb[0].mxu0
    %v698 = vadd.f32 0.0, %v697
    %v699 = vpop.f32.mrb[0].mxu0
    %700 = vmatprep.mubr.f32.mxu0 0.0
    %701 = vmatmul.mubr.f32.gmra.mrb[0].mxu0 %v584
    %v702 = vpop.f32.mrb[0].mxu0
    %v703 = vadd.f32 0.0, %v702
    %v704 = vpop.f32.mrb[0].mxu0
    %705 = vmatprep.mubr.f32.mxu0 0.0
    %706 = vmatmul.mubr.f32.gmra.mrb[0].mxu0 %v585
    %v707 = vpop.f32.mrb[0].mxu0
    %v708 = vadd.f32 0.0, %v707
    %v709 = vpop.f32.mrb[0].mxu0
    %710 = vmatprep.mubr.f32.mxu0 0.0
    %711 = vmatmul.mubr.f32.gmra.mrb[0].mxu0 %v586
    %v712 = vpop.f32.mrb[0].mxu0
    %v713 = vadd.f32 0.0, %v712
    %v714 = vpop.f32.mrb[0].mxu0
    %715 = vmatprep.mubr.f32.mxu0 0.0
    %716 = vmatmul.mubr.f32.gmra.mrb[0].mxu0 %v587
    %v717 = vpop.f32.mrb[0].mxu0
    %v718 = vadd.f32 0.0, %v717
    %v719 = vpop.f32.mrb[0].mxu0
    %720 = vmatprep.mubr.f32.mxu0 0.0
    %721 = vmatmul.mubr.f32.gmra.mrb[0].mxu0 %v588
    %v722 = vpop.f32.mrb[0].mxu0
    %v723 = vadd.f32 0.0, %v722
    %v724 = vpop.f32.mrb[0].mxu0
    %725 = vmatprep.mubr.f32.mxu0 0.0
    %726 = vmatmul.mubr.f32.gmra.mrb[0].mxu0 %v589
    %v727 = vpop.f32.mrb[0].mxu0
    %v728 = vadd.f32 0.0, %v727
    %v729 = vpop.f32.mrb[0].mxu0
    %730 = vmatprep.mubr.f32.mxu0 0.0
    %731 = vmatmul.mubr.f32.gmra.mrb[0].mxu0 %v590
    %v732 = vpop.f32.mrb[0].mxu0
    %v733 = vadd.f32 0.0, %v732
    %v734 = vpop.f32.mrb[0].mxu0
    %735 = vdwg.mxu0
    %736 = vst [vmem:[#allocation7] sm:$0xff] %v658
    %737 = vst [vmem:[#allocation7 + $0x8] sm:$0xff] %v663
    %738 = vst [vmem:[#allocation7 + $0x10] sm:$0xff] %v668
    %739 = vst [vmem:[#allocation7 + $0x18] sm:$0xff] %v673
    %740 = vst [vmem:[#allocation7 + $0x20] sm:$0xff] %v678
    %741 = vst [vmem:[#allocation7 + $0x28] sm:$0xff] %v683
    %742 = vst [vmem:[#allocation7 + $0x30] sm:$0xff] %v688
    %743 = vst [vmem:[#allocation7 + $0x38] sm:$0xff] %v693
    %744 = vst [vmem:[#allocation7 + $0x40] sm:$0xff] %v698
    %745 = vst [vmem:[#allocation7 + $0x48] sm:$0xff] %v703
    %746 = vst [vmem:[#allocation7 + $0x50] sm:$0xff] %v708
    %747 = vst [vmem:[#allocation7 + $0x58] sm:$0xff] %v713
    %748 = vst [vmem:[#allocation7 + $0x60] sm:$0xff] %v718
    %749 = vst [vmem:[#allocation7 + $0x68] sm:$0xff] %v723
    %750 = vst [vmem:[#allocation7 + $0x70] sm:$0xff] %v728
    %751 = vst [vmem:[#allocation7 + $0x78] sm:$0xff] %v733
    %vm752 = vcmask 7168
    %753 = vst.msk [vmem:[%s3] sm:$0xff] %vm752, %v512
    %754 = vst.msk [vmem:[%s3 + $0x8] sm:$0xff] %vm752, %v514
    %755 = vst.msk [vmem:[%s3 + $0x10] sm:$0xff] %vm752, %v516
    %756 = vst.msk [vmem:[%s3 + $0x18] sm:$0xff] %vm752, %v518
    %757 = vst.msk [vmem:[%s3 + $0x20] sm:$0xff] %vm752, %v520
    %758 = vst.msk [vmem:[%s3 + $0x28] sm:$0xff] %vm752, %v522
    %759 = vst.msk [vmem:[%s3 + $0x30] sm:$0xff] %vm752, %v524
    %760 = vst.msk [vmem:[%s3 + $0x38] sm:$0xff] %vm752, %v526
    %761 = vst.msk [vmem:[%s3 + $0x40] sm:$0xff] %vm752, %v528
    %762 = vst.msk [vmem:[%s3 + $0x48] sm:$0xff] %vm752, %v530
    %763 = vst.msk [vmem:[%s3 + $0x50] sm:$0xff] %vm752, %v532
    %764 = vst.msk [vmem:[%s3 + $0x58] sm:$0xff] %vm752, %v534
    %765 = vst.msk [vmem:[%s3 + $0x60] sm:$0xff] %vm752, %v536
    %766 = vst.msk [vmem:[%s3 + $0x68] sm:$0xff] %vm752, %v538
    %767 = vst.msk [vmem:[%s3 + $0x70] sm:$0xff] %vm752, %v540
    %768 = vst.msk [vmem:[%s3 + $0x78] sm:$0xff] %vm752, %v542
    // Predicated region
    $region18: #{tpu_custom_call.1} parent=1 // pred_check
      _
    $region19: #{tpu_custom_call.1} parent=1 // pred_check_branch
      %770 = sbr.rel (0) target = $region21
    $region20: #{tpu_custom_call.1} parent=1 // pred_region
      %s772 = ssub.s32 2048, 2048
      %773 = vsyncadd [#allocation4], %s772
      %s774 = sshll.u32 [#allocation7], 4
      %s775 = int_to_ptr.vmem [resolvable:$true] %s774
      %780 = dma.vmem_to_hbm [thread:$0]  %s775, 2048, %s2, [#allocation4], 128, 128, 8
    $region21: #{tpu_custom_call.1} parent=1 // pred_fallthru
      _
    // Predicated region
    $region22: #{tpu_custom_call.1} parent=1 // pred_check
      _
    $region23: #{tpu_custom_call.1} parent=1 // pred_check_branch
      %782 = sbr.rel (0) target = $region25
    $region24: #{tpu_custom_call.1} parent=1 // pred_region
      _
    $region25: #{tpu_custom_call.1} parent=1 // pred_fallthru
      _
    // Predicated region
    $region26: #{tpu_custom_call.1} parent=1 // pred_check
      _
    $region27: #{tpu_custom_call.1} parent=1 // pred_check_branch
      %784 = sbr.rel (0) target = $region29
    $region28: #{tpu_custom_call.1} parent=1 // pred_region
      %785 = dma.done [#allocation4], 2048
    $region29: #{tpu_custom_call.1} parent=1 // pred_fallthru
      _
    // Predicated region
    $region30: #{tpu_custom_call.1} parent=1 // pred_check
      _
    $region31: #{tpu_custom_call.1} parent=1 // pred_check_branch
      %787 = sbr.rel (0) target = $region33
    $region32: #{tpu_custom_call.1} parent=1 // pred_region
      _
    $region33: #{tpu_custom_call.1} parent=1 // pred_fallthru
      _
    %788 = vsyncpa [#allocation3], 1
    %789 = vsyncpa [#allocation6], 1
    %790 = vsyncpa [#allocation4], 1

</llo_original>
